<compile_context>
chip_gen: v5e
topology: v5e:2x2
jax: 0.10.0
libtpu: 0.0.40
codegen_flags: <defaults>
</compile_context>

<pallas_src>
import functools

import jax
import jax.numpy as jnp
from jax.experimental import pallas as pl
from jax.experimental.pallas import tpu as pltpu


def _quaternion_transpose_weight(r_w, i_w, j_w, k_w):
    # Mirrors the torch.cat calls in quaternion_transpose_conv:
    # components are (I, O, kH, kW); result is (4I, 4O, kH, kW) = (Cin, Cout, kH, kW)
    cat_r = jnp.concatenate([r_w, -i_w, -j_w, -k_w], axis=1)
    cat_i = jnp.concatenate([i_w,  r_w, -k_w,  j_w], axis=1)
    cat_j = jnp.concatenate([j_w,  k_w,  r_w, -i_w], axis=1)
    cat_k = jnp.concatenate([k_w, -j_w,  i_w,  r_w], axis=1)
    return jnp.concatenate([cat_r, cat_i, cat_j, cat_k], axis=0)


def _round_up(x, m):
    return (x + m - 1) // m * m


def _phase_taps(K, s, p, d, r):
    """Kernel taps contributing to output phase r (= out_idx % s) and their input offsets."""
    taps = []
    for k in range(K):
        if (k * d) % s == (r + p) % s:
            taps.append((k, (r + p - k * d) // s))   # exact division by construction
    return taps


def _pads(taps_list, Q, size):
    """Left/right zero padding needed so every valid tap access stays in bounds."""
    lo, hi = 0, size - 1
    for r, taps in enumerate(taps_list):
        if not taps or Q[r] == 0:
            continue
        offs = [o for _, o in taps]
        lo = min(lo, min(offs))
        hi = max(hi, Q[r] - 1 + max(offs))
    return max(0, -lo), max(0, hi - (size - 1))


def _qtconv_kernel(x_ref, w_ref, b_ref, o_ref, *, phase_taps, cout, mb):
    # x_ref: (Cin, FLAT)   one padded, flattened image (fetched from HBM once per n)
    # w_ref: (G, Cout, Cin) all Hamilton-assembled taps, phase-major order (resident)
    # b_ref: (Cout, 1) f32
    # o_ref: (Cout, MB)    lane-dense output slab for this (image, phase)
    ph = pl.program_id(1)
    for c, taps in enumerate(phase_taps):           # static unroll over the s*s phases
        @pl.when(ph == c)
        def _(taps=taps):
            acc = jnp.zeros((cout, mb), jnp.float32)
            for g, off in taps:                     # static tap loop; off known at trace time
                acc = acc + jnp.dot(w_ref[g], x_ref[:, off:off + mb],
                                    preferred_element_type=jnp.float32)
            o_ref[...] = (acc + b_ref[...]).astype(o_ref.dtype)


def quaternion_transpose_conv2d(x_nchw, r_w, i_w, j_w, k_w, bias, *,
                                stride, padding, output_padding, dilation,
                                use_bf16=True):
    # use_bf16=True runs MXU-native bf16 operands with f32 accumulation; set False
    # for f32 operands if bit-level parity with the f32 torch op is required.
    s, p, op, d = stride, padding, output_padding, dilation
    N, Cin, H, W = x_nchw.shape

    W_full = _quaternion_transpose_weight(r_w, i_w, j_w, k_w)       # (Cin, Cout, KH, KW)
    Cin_w, Cout, KH, KW = W_full.shape
    assert Cin_w == Cin

    H_out = (H - 1) * s - 2 * p + d * (KH - 1) + op + 1
    W_out = (W - 1) * s - 2 * p + d * (KW - 1) + op + 1

    # ---- sub-pixel (phase) decomposition: conv_transpose == s*s small stride-1 convs ----
    taps_h = [_phase_taps(KH, s, p, d, r) for r in range(s)]
    taps_w = [_phase_taps(KW, s, p, d, r) for r in range(s)]
    Qh = [len(range(r, H_out, s)) for r in range(s)]                 # rows per output phase
    Qw = [len(range(r, W_out, s)) for r in range(s)]
    Qh_max, Qw_max = max(Qh), max(Qw)

    PLh, PRh = _pads(taps_h, Qh, H)
    PLw, PRw = _pads(taps_w, Qw, W)
    Wp = W + PLw + PRw

    # Lane-dense output slab per (image, phase): Qh_max full padded rows, padded to 128.
    MB = _round_up(Qh_max * Wp, 128)

    # Per-(phase, tap) flat window offsets into the padded, flattened image.  The window
    # for tap (oh, ow) is x_flat[:, off:off+MB] with off = (oh+PLh)*Wp + (ow+PLw); element
    # j = qh*Wp + qw of that slice is exactly input pixel (qh+oh, qw+ow).  The extra
    # columns qw >= Qw and rows qh >= Qh hold finite garbage and are cropped afterwards.
    P = s * s
    phase_taps, w_gather, max_off = [], [], 0
    for rh in range(s):
        for rw in range(s):
            lst = []
            for (kh, oh) in taps_h[rh]:
                for (kw, ow) in taps_w[rw]:
                    off = (oh + PLh) * Wp + (ow + PLw)
                    lst.append((len(w_gather), off))
                    max_off = max(max_off, off)
                    w_gather.append(kh * KW + kw)
            phase_taps.append(lst)
    G = max(len(w_gather), 1)
    if not w_gather:
        w_gather.append(0)

    # Grow the bottom row padding so every window [off, off+MB) stays inside the image.
    Hp = H + PLh + PRh
    need = max_off + MB
    if need > Hp * Wp:
        PRh += -(-(need - Hp * Wp) // Wp)
        Hp = H + PLh + PRh
    FLAT = Hp * Wp

    cdt = jnp.bfloat16 if use_bf16 else jnp.float32
    # Cast BEFORE padding/reshaping: one pad over the un-duplicated input, free reshape.
    x_flat = jnp.pad(x_nchw.astype(cdt),
                     ((0, 0), (0, 0), (PLh, PRh), (PLw, PRw))).reshape(N, Cin, FLAT)

    # Weight slab (G, Cout, Cin) in phase-major tap order (tiny, gathered once).
    w_taps = jnp.transpose(W_full, (2, 3, 1, 0)).reshape(KH * KW, Cout, Cin)
    w_all = jnp.take(w_taps, jnp.asarray(w_gather, jnp.int32), axis=0).astype(cdt)

    bias2d = bias.reshape(Cout, 1).astype(jnp.float32)
    out_dtype = x_nchw.dtype

    in_item = jnp.dtype(cdt).itemsize
    out_item = jnp.dtype(out_dtype).itemsize
    total_taps = sum(len(t) for t in phase_taps)
    flops = 2 * N * Cout * Cin * MB * max(total_taps, 1)
    bytes_accessed = (N * Cin * FLAT * in_item + G * Cout * Cin * in_item
                      + Cout * 4 + N * P * Cout * MB * out_item)
    # Per-step VMEM (input block + weights + bias + output block), double-buffered.
    vmem_need = 2 * (Cin * FLAT * in_item + G * Cout * Cin * in_item
                     + Cout * 4 + Cout * MB * 4)
    vmem_limit = int(min(max(2 * vmem_need, 32 * 1024 * 1024), 64 * 1024 * 1024))

    kernel = functools.partial(_qtconv_kernel,
                               phase_taps=phase_taps, cout=Cout, mb=MB)

    out = pl.pallas_call(
        kernel,
        out_shape=jax.ShapeDtypeStruct((N, P, Cout, MB), out_dtype),
        grid_spec=pltpu.PrefetchScalarGridSpec(
            num_scalar_prefetch=0,
            # Batch outermost: the x block index is constant across the P inner phase
            # steps, so the pipeline fetches each image from HBM exactly once.
            grid=(N, P),
            in_specs=[
                pl.BlockSpec((None, Cin, FLAT), lambda n, ph: (n, 0, 0)),   # image
                pl.BlockSpec((G, Cout, Cin), lambda n, ph: (0, 0, 0)),      # weights
                pl.BlockSpec((Cout, 1), lambda n, ph: (0, 0)),              # bias
            ],
            out_specs=pl.BlockSpec((None, None, Cout, MB),
                                   lambda n, ph: (n, ph, 0, 0)),
        ),
        compiler_params=pltpu.CompilerParams(
            dimension_semantics=("parallel", "parallel"),
            vmem_limit_bytes=vmem_limit),
        cost_estimate=pl.CostEstimate(flops=flops, transcendentals=0,
                                      bytes_accessed=bytes_accessed),
    )(x_flat, w_all, bias2d)

    # Single reshape/transpose interleave of the s*s phase slabs back into NCHW.
    y = out[:, :, :, :Qh_max * Wp].reshape(N, s, s, Cout, Qh_max, Wp)[..., :Qw_max]
    y = jnp.transpose(y, (0, 3, 4, 1, 5, 2))            # (N, Cout, qh, rh, qw, rw)
    y = y.reshape(N, Cout, Qh_max * s, Qw_max * s)[:, :, :H_out, :W_out]
    return y.astype(x_nchw.dtype)


if __name__ == "__main__":
    key = jax.random.PRNGKey(0)

    # Module config: QuaternionTransposeConv(8, 16, kernel_size=3, stride=2,
    #                operation='convolution2d', padding=1, output_padding=1, dilation=1)
    in_channels, out_channels = 8, 16
    kernel_size, stride, padding, output_padding, dilation = 3, 2, 1, 1, 1
    I, O = in_channels // 4, out_channels // 4
    w_shape = (I, O, kernel_size, kernel_size)   # per-component weight shape

    k_x, k_r, k_i, k_j, k_k = jax.random.split(key, 5)
    # Deterministic 'he'-scaled init (stands in for RandomState-based quaternion_init).
    fan_in = I * kernel_size * kernel_size
    scale = 1.0 / jnp.sqrt(2.0 * fan_in)
    r_w = scale * jax.random.normal(k_r, w_shape, jnp.float32)
    i_w = scale * jax.random.normal(k_i, w_shape, jnp.float32)
    j_w = scale * jax.random.normal(k_j, w_shape, jnp.float32)
    k_w = scale * jax.random.normal(k_k, w_shape, jnp.float32)
    bias = jnp.zeros((out_channels,), jnp.float32)  # reset_parameters() zeroes bias

    x = jax.random.normal(k_x, (2, in_channels, 8, 8), jnp.float32)  # NCHW

    y = quaternion_transpose_conv2d(
        x, r_w, i_w, j_w, k_w, bias,
        stride=stride, padding=padding,
        output_padding=output_padding, dilation=dilation)
    y = jax.block_until_ready(y)

    # Reference: XLA transposed-conv formulation.  The Pallas kernel runs its matmuls
    # with bf16 operands (f32 accumulation), so feed the reference the same bf16-rounded
    # values; remaining differences are only f32 summation-order noise.
    xb = x.astype(jnp.bfloat16).astype(jnp.float32)
    W_full = _quaternion_transpose_weight(r_w, i_w, j_w, k_w)
    Wb = W_full.astype(jnp.bfloat16).astype(jnp.float32)
    w_oihw = jnp.transpose(Wb[:, :, ::-1, ::-1], (1, 0, 2, 3))       # (Cout, Cin, KH, KW)
    L = dilation * (kernel_size - 1) - padding
    ref = jax.lax.conv_general_dilated(
        xb, w_oihw, window_strides=(1, 1),
        padding=[(L, L + output_padding), (L, L + output_padding)],
        lhs_dilation=(stride, stride), rhs_dilation=(dilation, dilation),
        dimension_numbers=('NCHW', 'OIHW', 'NCHW'),
        precision=jax.lax.Precision.HIGHEST,
    ) + bias.reshape(1, -1, 1, 1)

    assert y.shape == ref.shape == (2, out_channels, 16, 16), (y.shape, ref.shape)
    assert jnp.allclose(y, ref, atol=2e-3, rtol=2e-3), float(jnp.max(jnp.abs(y - ref)))
    print("KERNEL_OK")
</pallas_src>

<mosaic_0001>
module attributes {stable_mosaic.version = 11 : i64} {
  func.func @_qtconv_kernel(%arg0: i32, %arg1: i32, %arg2: memref<1x8x144xbf16, #tpu.memory_space<vmem>>, %arg3: memref<9x16x8xbf16, #tpu.memory_space<vmem>>, %arg4: memref<16x1xf32, #tpu.memory_space<vmem>>, %arg5: memref<1x1x16x128xf32, #tpu.memory_space<vmem>>) attributes {dimension_semantics = [#tpu.dimension_semantics<parallel>, #tpu.dimension_semantics<parallel>], iteration_bounds = array<i64: 2, 4>, scalar_prefetch = 0 : i64, scratch_operands = 0 : i64, tpu.core_type = #tpu.core_type<tc>, window_params = [{transform_indices = @transform_0, window_bounds = array<i64: 1, 8, 144>}, {pipeline_mode = #tpu.pipeline_mode<synchronous>, transform_indices = @transform_1, window_bounds = array<i64: 9, 16, 8>}, {pipeline_mode = #tpu.pipeline_mode<synchronous>, transform_indices = @transform_2, window_bounds = array<i64: 16, 1>}, {transform_indices = @transform_3, window_bounds = array<i64: 1, 1, 16, 128>}]} {
    %c0_i32 = arith.constant 0 : i32
    %0 = arith.cmpi eq, %arg1, %c0_i32 : i32
    %1 = arith.extui %0 : i1 to i32
    %c0_i32_0 = arith.constant 0 : i32
    %2 = arith.cmpi ne, %1, %c0_i32_0 : i32
    scf.if %2 {
      %cst = arith.constant 0.000000e+00 : f32
      %12 = vector.broadcast %cst : f32 to vector<16x128xf32>
      %c0 = arith.constant 0 : index
      %c0_4 = arith.constant 0 : index
      %c0_5 = arith.constant 0 : index
      %13 = vector.load %arg3[%c0, %c0_4, %c0_5] : memref<9x16x8xbf16, #tpu.memory_space<vmem>>, vector<1x16x8xbf16>
      %14 = vector.shape_cast %13 : vector<1x16x8xbf16> to vector<16x8xbf16>
      %c0_6 = arith.constant 0 : index
      %c0_7 = arith.constant 0 : index
      %c0_8 = arith.constant 0 : index
      %15 = vector.load %arg2[%c0_6, %c0_7, %c0_8] : memref<1x8x144xbf16, #tpu.memory_space<vmem>>, vector<1x8x128xbf16>
      %16 = vector.shape_cast %15 : vector<1x8x128xbf16> to vector<8x128xbf16>
      %cst_9 = arith.constant dense<0.000000e+00> : vector<16x128xf32>
      %17 = tpu.matmul %14, %16, %cst_9 {dimension_numbers = #tpu.dot_dimension_numbers<[1], [0], [0], [1], [0, 0, 1, 1], [], []>} : vector<16x8xbf16>, vector<8x128xbf16>, vector<16x128xf32> -> vector<16x128xf32>
      %18 = arith.addf %12, %17 : vector<16x128xf32>
      %c0_10 = arith.constant 0 : index
      %c0_11 = arith.constant 0 : index
      %19 = vector.load %arg4[%c0_10, %c0_11] : memref<16x1xf32, #tpu.memory_space<vmem>>, vector<16x1xf32>
      %20 = vector.broadcast %19 : vector<16x1xf32> to vector<16x128xf32>
      %21 = arith.addf %18, %20 : vector<16x128xf32>
      %c0_12 = arith.constant 0 : index
      %c0_13 = arith.constant 0 : index
      %c0_14 = arith.constant 0 : index
      %c0_15 = arith.constant 0 : index
      %22 = vector.load %arg5[%c0_12, %c0_13, %c0_14, %c0_15] : memref<1x1x16x128xf32, #tpu.memory_space<vmem>>, vector<1x1x16x128xf32>
      %23 = vector.shape_cast %22 : vector<1x1x16x128xf32> to vector<16x128xf32>
      %24 = vector.shape_cast %21 : vector<16x128xf32> to vector<1x1x16x128xf32>
      tpu.vector_store %arg5[%c0_12, %c0_13, %c0_14, %c0_15], %24 {strides = array<i32>} : memref<1x1x16x128xf32, #tpu.memory_space<vmem>>, vector<1x1x16x128xf32>,
    } else {
    }
    %c1_i32 = arith.constant 1 : i32
    %3 = arith.cmpi eq, %arg1, %c1_i32 : i32
    %4 = arith.extui %3 : i1 to i32
    %c0_i32_1 = arith.constant 0 : i32
    %5 = arith.cmpi ne, %4, %c0_i32_1 : i32
    scf.if %5 {
      %cst = arith.constant 0.000000e+00 : f32
      %12 = vector.broadcast %cst : f32 to vector<16x128xf32>
      %c1 = arith.constant 1 : index
      %c0 = arith.constant 0 : index
      %c0_4 = arith.constant 0 : index
      %13 = vector.load %arg3[%c1, %c0, %c0_4] : memref<9x16x8xbf16, #tpu.memory_space<vmem>>, vector<1x16x8xbf16>
      %14 = vector.shape_cast %13 : vector<1x16x8xbf16> to vector<16x8xbf16>
      %c0_5 = arith.constant 0 : index
      %c0_6 = arith.constant 0 : index
      %c1_7 = arith.constant 1 : index
      %15 = vector.load %arg2[%c0_5, %c0_6, %c1_7] : memref<1x8x144xbf16, #tpu.memory_space<vmem>>, vector<1x8x128xbf16>
      %16 = vector.shape_cast %15 : vector<1x8x128xbf16> to vector<8x128xbf16>
      %cst_8 = arith.constant dense<0.000000e+00> : vector<16x128xf32>
      %17 = tpu.matmul %14, %16, %cst_8 {dimension_numbers = #tpu.dot_dimension_numbers<[1], [0], [0], [1], [0, 0, 1, 1], [], []>} : vector<16x8xbf16>, vector<8x128xbf16>, vector<16x128xf32> -> vector<16x128xf32>
      %18 = arith.addf %12, %17 : vector<16x128xf32>
      %c2 = arith.constant 2 : index
      %c0_9 = arith.constant 0 : index
      %c0_10 = arith.constant 0 : index
      %19 = vector.load %arg3[%c2, %c0_9, %c0_10] : memref<9x16x8xbf16, #tpu.memory_space<vmem>>, vector<1x16x8xbf16>
      %20 = vector.shape_cast %19 : vector<1x16x8xbf16> to vector<16x8xbf16>
      %c0_11 = arith.constant 0 : index
      %c0_12 = arith.constant 0 : index
      %c0_13 = arith.constant 0 : index
      %21 = vector.load %arg2[%c0_11, %c0_12, %c0_13] : memref<1x8x144xbf16, #tpu.memory_space<vmem>>, vector<1x8x128xbf16>
      %22 = vector.shape_cast %21 : vector<1x8x128xbf16> to vector<8x128xbf16>
      %cst_14 = arith.constant dense<0.000000e+00> : vector<16x128xf32>
      %23 = tpu.matmul %20, %22, %cst_14 {dimension_numbers = #tpu.dot_dimension_numbers<[1], [0], [0], [1], [0, 0, 1, 1], [], []>} : vector<16x8xbf16>, vector<8x128xbf16>, vector<16x128xf32> -> vector<16x128xf32>
      %24 = arith.addf %18, %23 : vector<16x128xf32>
      %c0_15 = arith.constant 0 : index
      %c0_16 = arith.constant 0 : index
      %25 = vector.load %arg4[%c0_15, %c0_16] : memref<16x1xf32, #tpu.memory_space<vmem>>, vector<16x1xf32>
      %26 = vector.broadcast %25 : vector<16x1xf32> to vector<16x128xf32>
      %27 = arith.addf %24, %26 : vector<16x128xf32>
      %c0_17 = arith.constant 0 : index
      %c0_18 = arith.constant 0 : index
      %c0_19 = arith.constant 0 : index
      %c0_20 = arith.constant 0 : index
      %28 = vector.load %arg5[%c0_17, %c0_18, %c0_19, %c0_20] : memref<1x1x16x128xf32, #tpu.memory_space<vmem>>, vector<1x1x16x128xf32>
      %29 = vector.shape_cast %28 : vector<1x1x16x128xf32> to vector<16x128xf32>
      %30 = vector.shape_cast %27 : vector<16x128xf32> to vector<1x1x16x128xf32>
      tpu.vector_store %arg5[%c0_17, %c0_18, %c0_19, %c0_20], %30 {strides = array<i32>} : memref<1x1x16x128xf32, #tpu.memory_space<vmem>>, vector<1x1x16x128xf32>,
    } else {
    }
    %c2_i32 = arith.constant 2 : i32
    %6 = arith.cmpi eq, %arg1, %c2_i32 : i32
    %7 = arith.extui %6 : i1 to i32
    %c0_i32_2 = arith.constant 0 : i32
    %8 = arith.cmpi ne, %7, %c0_i32_2 : i32
    scf.if %8 {
      %cst = arith.constant 0.000000e+00 : f32
      %12 = vector.broadcast %cst : f32 to vector<16x128xf32>
      %c3 = arith.constant 3 : index
      %c0 = arith.constant 0 : index
      %c0_4 = arith.constant 0 : index
      %13 = vector.load %arg3[%c3, %c0, %c0_4] : memref<9x16x8xbf16, #tpu.memory_space<vmem>>, vector<1x16x8xbf16>
      %14 = vector.shape_cast %13 : vector<1x16x8xbf16> to vector<16x8xbf16>
      %c0_5 = arith.constant 0 : index
      %c0_6 = arith.constant 0 : index
      %c9 = arith.constant 9 : index
      %15 = vector.load %arg2[%c0_5, %c0_6, %c9] : memref<1x8x144xbf16, #tpu.memory_space<vmem>>, vector<1x8x128xbf16>
      %16 = vector.shape_cast %15 : vector<1x8x128xbf16> to vector<8x128xbf16>
      %cst_7 = arith.constant dense<0.000000e+00> : vector<16x128xf32>
      %17 = tpu.matmul %14, %16, %cst_7 {dimension_numbers = #tpu.dot_dimension_numbers<[1], [0], [0], [1], [0, 0, 1, 1], [], []>} : vector<16x8xbf16>, vector<8x128xbf16>, vector<16x128xf32> -> vector<16x128xf32>
      %18 = arith.addf %12, %17 : vector<16x128xf32>
      %c4 = arith.constant 4 : index
      %c0_8 = arith.constant 0 : index
      %c0_9 = arith.constant 0 : index
      %19 = vector.load %arg3[%c4, %c0_8, %c0_9] : memref<9x16x8xbf16, #tpu.memory_space<vmem>>, vector<1x16x8xbf16>
      %20 = vector.shape_cast %19 : vector<1x16x8xbf16> to vector<16x8xbf16>
      %c0_10 = arith.constant 0 : index
      %c0_11 = arith.constant 0 : index
      %c0_12 = arith.constant 0 : index
      %21 = vector.load %arg2[%c0_10, %c0_11, %c0_12] : memref<1x8x144xbf16, #tpu.memory_space<vmem>>, vector<1x8x128xbf16>
      %22 = vector.shape_cast %21 : vector<1x8x128xbf16> to vector<8x128xbf16>
      %cst_13 = arith.constant dense<0.000000e+00> : vector<16x128xf32>
      %23 = tpu.matmul %20, %22, %cst_13 {dimension_numbers = #tpu.dot_dimension_numbers<[1], [0], [0], [1], [0, 0, 1, 1], [], []>} : vector<16x8xbf16>, vector<8x128xbf16>, vector<16x128xf32> -> vector<16x128xf32>
      %24 = arith.addf %18, %23 : vector<16x128xf32>
      %c0_14 = arith.constant 0 : index
      %c0_15 = arith.constant 0 : index
      %25 = vector.load %arg4[%c0_14, %c0_15] : memref<16x1xf32, #tpu.memory_space<vmem>>, vector<16x1xf32>
      %26 = vector.broadcast %25 : vector<16x1xf32> to vector<16x128xf32>
      %27 = arith.addf %24, %26 : vector<16x128xf32>
      %c0_16 = arith.constant 0 : index
      %c0_17 = arith.constant 0 : index
      %c0_18 = arith.constant 0 : index
      %c0_19 = arith.constant 0 : index
      %28 = vector.load %arg5[%c0_16, %c0_17, %c0_18, %c0_19] : memref<1x1x16x128xf32, #tpu.memory_space<vmem>>, vector<1x1x16x128xf32>
      %29 = vector.shape_cast %28 : vector<1x1x16x128xf32> to vector<16x128xf32>
      %30 = vector.shape_cast %27 : vector<16x128xf32> to vector<1x1x16x128xf32>
      tpu.vector_store %arg5[%c0_16, %c0_17, %c0_18, %c0_19], %30 {strides = array<i32>} : memref<1x1x16x128xf32, #tpu.memory_space<vmem>>, vector<1x1x16x128xf32>,
    } else {
    }
    %c3_i32 = arith.constant 3 : i32
    %9 = arith.cmpi eq, %arg1, %c3_i32 : i32
    %10 = arith.extui %9 : i1 to i32
    %c0_i32_3 = arith.constant 0 : i32
    %11 = arith.cmpi ne, %10, %c0_i32_3 : i32
    scf.if %11 {
      %cst = arith.constant 0.000000e+00 : f32
      %12 = vector.broadcast %cst : f32 to vector<16x128xf32>
      %c5 = arith.constant 5 : index
      %c0 = arith.constant 0 : index
      %c0_4 = arith.constant 0 : index
      %13 = vector.load %arg3[%c5, %c0, %c0_4] : memref<9x16x8xbf16, #tpu.memory_space<vmem>>, vector<1x16x8xbf16>
      %14 = vector.shape_cast %13 : vector<1x16x8xbf16> to vector<16x8xbf16>
      %c0_5 = arith.constant 0 : index
      %c0_6 = arith.constant 0 : index
      %c10 = arith.constant 10 : index
      %15 = vector.load %arg2[%c0_5, %c0_6, %c10] : memref<1x8x144xbf16, #tpu.memory_space<vmem>>, vector<1x8x128xbf16>
      %16 = vector.shape_cast %15 : vector<1x8x128xbf16> to vector<8x128xbf16>
      %cst_7 = arith.constant dense<0.000000e+00> : vector<16x128xf32>
      %17 = tpu.matmul %14, %16, %cst_7 {dimension_numbers = #tpu.dot_dimension_numbers<[1], [0], [0], [1], [0, 0, 1, 1], [], []>} : vector<16x8xbf16>, vector<8x128xbf16>, vector<16x128xf32> -> vector<16x128xf32>
      %18 = arith.addf %12, %17 : vector<16x128xf32>
      %c6 = arith.constant 6 : index
      %c0_8 = arith.constant 0 : index
      %c0_9 = arith.constant 0 : index
      %19 = vector.load %arg3[%c6, %c0_8, %c0_9] : memref<9x16x8xbf16, #tpu.memory_space<vmem>>, vector<1x16x8xbf16>
      %20 = vector.shape_cast %19 : vector<1x16x8xbf16> to vector<16x8xbf16>
      %c0_10 = arith.constant 0 : index
      %c0_11 = arith.constant 0 : index
      %c9 = arith.constant 9 : index
      %21 = vector.load %arg2[%c0_10, %c0_11, %c9] : memref<1x8x144xbf16, #tpu.memory_space<vmem>>, vector<1x8x128xbf16>
      %22 = vector.shape_cast %21 : vector<1x8x128xbf16> to vector<8x128xbf16>
      %cst_12 = arith.constant dense<0.000000e+00> : vector<16x128xf32>
      %23 = tpu.matmul %20, %22, %cst_12 {dimension_numbers = #tpu.dot_dimension_numbers<[1], [0], [0], [1], [0, 0, 1, 1], [], []>} : vector<16x8xbf16>, vector<8x128xbf16>, vector<16x128xf32> -> vector<16x128xf32>
      %24 = arith.addf %18, %23 : vector<16x128xf32>
      %c7 = arith.constant 7 : index
      %c0_13 = arith.constant 0 : index
      %c0_14 = arith.constant 0 : index
      %25 = vector.load %arg3[%c7, %c0_13, %c0_14] : memref<9x16x8xbf16, #tpu.memory_space<vmem>>, vector<1x16x8xbf16>
      %26 = vector.shape_cast %25 : vector<1x16x8xbf16> to vector<16x8xbf16>
      %c0_15 = arith.constant 0 : index
      %c0_16 = arith.constant 0 : index
      %c1 = arith.constant 1 : index
      %27 = vector.load %arg2[%c0_15, %c0_16, %c1] : memref<1x8x144xbf16, #tpu.memory_space<vmem>>, vector<1x8x128xbf16>
      %28 = vector.shape_cast %27 : vector<1x8x128xbf16> to vector<8x128xbf16>
      %cst_17 = arith.constant dense<0.000000e+00> : vector<16x128xf32>
      %29 = tpu.matmul %26, %28, %cst_17 {dimension_numbers = #tpu.dot_dimension_numbers<[1], [0], [0], [1], [0, 0, 1, 1], [], []>} : vector<16x8xbf16>, vector<8x128xbf16>, vector<16x128xf32> -> vector<16x128xf32>
      %30 = arith.addf %24, %29 : vector<16x128xf32>
      %c8 = arith.constant 8 : index
      %c0_18 = arith.constant 0 : index
      %c0_19 = arith.constant 0 : index
      %31 = vector.load %arg3[%c8, %c0_18, %c0_19] : memref<9x16x8xbf16, #tpu.memory_space<vmem>>, vector<1x16x8xbf16>
      %32 = vector.shape_cast %31 : vector<1x16x8xbf16> to vector<16x8xbf16>
      %c0_20 = arith.constant 0 : index
      %c0_21 = arith.constant 0 : index
      %c0_22 = arith.constant 0 : index
      %33 = vector.load %arg2[%c0_20, %c0_21, %c0_22] : memref<1x8x144xbf16, #tpu.memory_space<vmem>>, vector<1x8x128xbf16>
      %34 = vector.shape_cast %33 : vector<1x8x128xbf16> to vector<8x128xbf16>
      %cst_23 = arith.constant dense<0.000000e+00> : vector<16x128xf32>
      %35 = tpu.matmul %32, %34, %cst_23 {dimension_numbers = #tpu.dot_dimension_numbers<[1], [0], [0], [1], [0, 0, 1, 1], [], []>} : vector<16x8xbf16>, vector<8x128xbf16>, vector<16x128xf32> -> vector<16x128xf32>
      %36 = arith.addf %30, %35 : vector<16x128xf32>
      %c0_24 = arith.constant 0 : index
      %c0_25 = arith.constant 0 : index
      %37 = vector.load %arg4[%c0_24, %c0_25] : memref<16x1xf32, #tpu.memory_space<vmem>>, vector<16x1xf32>
      %38 = vector.broadcast %37 : vector<16x1xf32> to vector<16x128xf32>
      %39 = arith.addf %36, %38 : vector<16x128xf32>
      %c0_26 = arith.constant 0 : index
      %c0_27 = arith.constant 0 : index
      %c0_28 = arith.constant 0 : index
      %c0_29 = arith.constant 0 : index
      %40 = vector.load %arg5[%c0_26, %c0_27, %c0_28, %c0_29] : memref<1x1x16x128xf32, #tpu.memory_space<vmem>>, vector<1x1x16x128xf32>
      %41 = vector.shape_cast %40 : vector<1x1x16x128xf32> to vector<16x128xf32>
      %42 = vector.shape_cast %39 : vector<16x128xf32> to vector<1x1x16x128xf32>
      tpu.vector_store %arg5[%c0_26, %c0_27, %c0_28, %c0_29], %42 {strides = array<i32>} : memref<1x1x16x128xf32, #tpu.memory_space<vmem>>, vector<1x1x16x128xf32>,
    } else {
    }
    return
  }
  func.func @transform_0(%arg0: i32, %arg1: i32) -> (i32, i32, i32) {
    %c0_i32 = arith.constant 0 : i32
    %c0_i32_0 = arith.constant 0 : i32
    %c0_i32_1 = arith.constant 0 : i32
    return %arg0, %c0_i32, %c0_i32_0 : i32, i32, i32
  }
  func.func @transform_1(%arg0: i32, %arg1: i32) -> (i32, i32, i32) {
    %c0_i32 = arith.constant 0 : i32
    %c0_i32_0 = arith.constant 0 : i32
    %c0_i32_1 = arith.constant 0 : i32
    %c0_i32_2 = arith.constant 0 : i32
    return %c0_i32, %c0_i32_0, %c0_i32_1 : i32, i32, i32
  }
  func.func @transform_2(%arg0: i32, %arg1: i32) -> (i32, i32) {
    %c0_i32 = arith.constant 0 : i32
    %c0_i32_0 = arith.constant 0 : i32
    %c0_i32_1 = arith.constant 0 : i32
    return %c0_i32, %c0_i32_0 : i32, i32
  }
  func.func @transform_3(%arg0: i32, %arg1: i32) -> (i32, i32, i32, i32) {
    %c0_i32 = arith.constant 0 : i32
    %c0_i32_0 = arith.constant 0 : i32
    %c0_i32_1 = arith.constant 0 : i32
    return %arg0, %arg1, %c0_i32, %c0_i32_0 : i32, i32, i32, i32
  }
}

</mosaic_0001>

<llo_original>
// kernel: tpu_custom_call.1
$region0: #{tpu_custom_call.1}
  #allocation0 [shape = 'u32[]', space=smem, size = 0x4, offset = 0x4, fixed_abs, tag = 'smem constant byte address 0x4 - core index']
  #allocation1 [shape = 'u32[72,128]{1,0:T(1,128)}', space=vmem, size = 0x9000, scoped, tag = 'internal scratch']
  %s0 = inlined_call_operand.vmem [shape: bf16[2,8,144], index: 0, kind: input, shape index: {}]
  %s1 = inlined_call_operand.vmem [shape: bf16[9,16,8], index: 1, kind: input, shape index: {}]
  %s2 = inlined_call_operand.vmem [shape: f32[16,1], index: 2, kind: input, shape index: {}]
  %s3 = inlined_call_operand.hbm [shape: f32[2,4,16,128], index: 3, kind: output, shape index: {}]
  %s4 = sld [smem:[#allocation0]]
  $region61: #{tpu_custom_call.1} parent=0
    _
  %s6 = ssub.s32 1, %s4
  %s7 = scalar_select 0, %s6, %s4
  $region1: #{tpu_custom_call.1} parent=0
    #allocation2 [shape = 'u8[16384]{0}', space=vmem, size = 0x4000, scoped, tag = 'output window, operand 0']
    #allocation3 [shape = 's32[2]{0}', space=sflag, size = 0x8, scoped, tag = 'scoped memory for tpu_custom_call.1']
    %8 = vsyncpa [#allocation3], 0
    %s9 = scalar_lea.sflag [#allocation3], 1
    %10 = vsyncpa %s9, 0
    loop: start=0, step=1, limit=10
    $region2: #{tpu_custom_call.1} parent=1 // loop_pre_header
      _
    $region3: #{tpu_custom_call.1} parent=1 // loop_header
      %s12 = sphi 0, %s16
      %p13 = scmp.ge.s32.totalorder %s12, 10
      %s19 = sphi 0, %s31
      %s20 = sphi 0, %s27
      %s21 = sphi 0, %s19
      %s22 = sphi 0, %s20
      %s23 = sphi 0, %s21
      %s24 = sphi 0, %s22
      %s34 = sphi 0, %s36
      %s37 = sphi 0, %s34
      %s38 = sphi 0, %s37
      %s54 = sphi 0, %s38
      %s58 = sphi 0, %s58
      %s60 = sphi 0, %s58
      %s61 = sphi 0, %s60
      %s75 = sphi 0, %s61
      %s79 = sphi 0, %s79
      %s81 = sphi 0, %s79
      %s82 = sphi 0, %s81
      %s96 = sphi 0, %s82
      %s104 = sphi 0, %s106
      %s107 = sphi 0, %s104
      %s108 = sphi 0, %s107
      %s124 = sphi 0, %s108
    $region4: #{tpu_custom_call.1} parent=1 // loop_header_branch
      %15 = sbr.rel (%p13) target = $region8
    $region5: #{tpu_custom_call.1} parent=1 // loop_body
      %s17 = ssub.s32 %s12, 1
      %s18 = ssub.s32 %s12, 2
      %s25 = sadd.s32 1, %s20
      %p26 = scmp.ge.s32.totalorder %s25, 4
      %s27 = scalar_select %p26, 0, %s25
      %s28 = sadd.s32 1, %s19
      %s29 = scalar_select %p26, %s28, %s19
      %p30 = scmp.ge.s32.totalorder %s29, 2
      %s31 = scalar_select %p30, 0, %s29
      %s32 = ssub.s32 %s19, %s31
      %p33 = scmp.eq.s32.totalorder %s32, 0
      %s35 = sadd.s32 %s34, 1
      %s36 = scalar_select %p33, %s34, %s35
      %p39 = pneg %p33
      %p40 = scmp.eq.s32.totalorder %s12, 7
      %p41 = por %p39, %p40
      %p42 = scmp.ne.s32.totalorder %s34, %s37
      %p43 = scmp.eq.s32.totalorder %s12, 0
      %p44 = por %p42, %p43
      %p45 = scmp.ne.s32.totalorder %s34, %s37
      %p46 = scmp.eq.s32.totalorder %s17, 7
      %p47 = por %p45, %p46
      %p48 = scmp.ne.s32.totalorder %s37, %s38
      %p49 = scmp.eq.s32.totalorder %s17, 0
      %p50 = por %p48, %p49
      %p51 = scmp.ne.s32.totalorder %s37, %s38
      %p52 = scmp.eq.s32.totalorder %s18, 7
      %p53 = por %p51, %p52
      %p55 = scmp.ne.s32.totalorder %s38, %s54
      %p56 = scmp.eq.s32.totalorder %s18, 0
      %p57 = por %p55, %p56
      %s59 = sadd.s32 %s58, 1
      %p62 = scmp.eq.s32.totalorder %s12, 7
      %p63 = scmp.ne.s32.totalorder %s58, %s60
      %p64 = scmp.eq.s32.totalorder %s12, 0
      %p65 = por %p63, %p64
      %p66 = scmp.ne.s32.totalorder %s58, %s60
      %p67 = scmp.eq.s32.totalorder %s17, 7
      %p68 = por %p66, %p67
      %p69 = scmp.ne.s32.totalorder %s60, %s61
      %p70 = scmp.eq.s32.totalorder %s17, 0
      %p71 = por %p69, %p70
      %p72 = scmp.ne.s32.totalorder %s60, %s61
      %p73 = scmp.eq.s32.totalorder %s18, 7
      %p74 = por %p72, %p73
      %p76 = scmp.ne.s32.totalorder %s61, %s75
      %p77 = scmp.eq.s32.totalorder %s18, 0
      %p78 = por %p76, %p77
      %s80 = sadd.s32 %s79, 1
      %p83 = scmp.eq.s32.totalorder %s12, 7
      %p84 = scmp.ne.s32.totalorder %s79, %s81
      %p85 = scmp.eq.s32.totalorder %s12, 0
      %p86 = por %p84, %p85
      %p87 = scmp.ne.s32.totalorder %s79, %s81
      %p88 = scmp.eq.s32.totalorder %s17, 7
      %p89 = por %p87, %p88
      %p90 = scmp.ne.s32.totalorder %s81, %s82
      %p91 = scmp.eq.s32.totalorder %s17, 0
      %p92 = por %p90, %p91
      %p93 = scmp.ne.s32.totalorder %s81, %s82
      %p94 = scmp.eq.s32.totalorder %s18, 7
      %p95 = por %p93, %p94
      %p97 = scmp.ne.s32.totalorder %s82, %s96
      %p98 = scmp.eq.s32.totalorder %s18, 0
      %p99 = por %p97, %p98
      %s100 = ssub.s32 %s19, %s31
      %s101 = ssub.s32 %s20, %s27
      %s102 = sor.u32 %s100, %s101
      %p103 = scmp.eq.s32.totalorder %s102, 0
      %s105 = sadd.s32 %s104, 1
      %s106 = scalar_select %p103, %s104, %s105
      %p109 = pneg %p103
      %p110 = scmp.eq.s32.totalorder %s12, 7
      %p111 = por %p109, %p110
      %p112 = scmp.ne.s32.totalorder %s104, %s107
      %p113 = scmp.eq.s32.totalorder %s12, 0
      %p114 = por %p112, %p113
      %p115 = scmp.ne.s32.totalorder %s104, %s107
      %p116 = scmp.eq.s32.totalorder %s17, 7
      %p117 = por %p115, %p116
      %p118 = scmp.ne.s32.totalorder %s107, %s108
      %p119 = scmp.eq.s32.totalorder %s17, 0
      %p120 = por %p118, %p119
      %p121 = scmp.ne.s32.totalorder %s107, %s108
      %p122 = scmp.eq.s32.totalorder %s18, 7
      %p123 = por %p121, %p122
      %p125 = scmp.ne.s32.totalorder %s108, %s124
      %p126 = scmp.eq.s32.totalorder %s18, 0
      %p127 = por %p125, %p126
      %p128 = scmp.le.s32.totalorder 1, %s12
      %p129 = scmp.lt.s32.totalorder %s12, 9
      %p130 = pnand %p128, %p129
      %p131 = pneg %p130
      // Predicated region
      $region9: #{tpu_custom_call.1} parent=5 // pred_check
        _
      $region10: #{tpu_custom_call.1} parent=5 // pred_check_branch
        %133 = sbr.rel (%p130) target = $region12
      $region11: #{tpu_custom_call.1} parent=5 // pred_region
        %s134 = ssub.s32 %s12, 1
        // Predicated region
        $region13: #{tpu_custom_call.1} parent=11 // pred_check
          %p135 = pneg %p71
        $region14: #{tpu_custom_call.1} parent=11 // pred_check_branch
          %137 = sbr.rel (%p135) target = $region16
        $region15: #{tpu_custom_call.1} parent=11 // pred_region
          _
        $region16: #{tpu_custom_call.1} parent=11 // pred_fallthru
          _
        // Predicated region
        $region17: #{tpu_custom_call.1} parent=11 // pred_check
          %p138 = pneg %p92
        $region18: #{tpu_custom_call.1} parent=11 // pred_check_branch
          %140 = sbr.rel (%p138) target = $region20
        $region19: #{tpu_custom_call.1} parent=11 // pred_region
          _
        $region20: #{tpu_custom_call.1} parent=11 // pred_fallthru
          _
      $region12: #{tpu_custom_call.1} parent=5 // pred_fallthru
        _
      %p141 = scmp.lt.s32.totalorder %s12, 8
      // Predicated region
      $region21: #{tpu_custom_call.1} parent=5 // pred_check
        %p142 = pneg %p141
      $region22: #{tpu_custom_call.1} parent=5 // pred_check_branch
        %144 = sbr.rel (%p142) target = $region24
      $region23: #{tpu_custom_call.1} parent=5 // pred_region
        // Predicated region
        $region25: #{tpu_custom_call.1} parent=23 // pred_check
          %p145 = pneg %p44
        $region26: #{tpu_custom_call.1} parent=23 // pred_check_branch
          %147 = sbr.rel (%p145) target = $region28
        $region27: #{tpu_custom_call.1} parent=23 // pred_region
          %p148 = scmp.lt.s32.totalorder %s19, 1
          %s149 = scalar_select %p148, %s19, 1
          %s150 = smul.addr %s149, 2
          %s151 = smul.addr %s150, 4
          %s152 = scalar_lea.vmem %s0, %s151
        $region28: #{tpu_custom_call.1} parent=23 // pred_fallthru
          _
      $region24: #{tpu_custom_call.1} parent=5 // pred_fallthru
        _
      %p153 = scmp.le.s32.totalorder 1, %s12
      %p154 = scmp.lt.s32.totalorder %s12, 9
      %p155 = pnand %p153, %p154
      %p156 = pneg %p155
      // Predicated region
      $region29: #{tpu_custom_call.1} parent=5 // pred_check
        _
      $region30: #{tpu_custom_call.1} parent=5 // pred_check_branch
        %158 = sbr.rel (%p155) target = $region32
      $region31: #{tpu_custom_call.1} parent=5 // pred_region
        %s159 = ssub.s32 %s12, 1
        %p160 = scmp.lt.s32.totalorder %s21, 1
        %s161 = scalar_select %p160, %s21, 1
        %s162 = smul.addr %s161, 2
        %s163 = smul.addr %s162, 4
        %s164 = scalar_lea.vmem %s0, %s163
        %p165 = pneg %p50
        %p166 = pneg %p47
        %p167 = pneg %p71
        %p168 = pneg %p68
        %p169 = pneg %p92
        %p170 = pneg %p89
        %p171 = pneg %p120
        %p172 = pneg %p117
        %s173 = sand.u32 %s107, 1
        %s174 = scalar_lea.sflag [#allocation3], %s173
        %s175 = sand.u32 %s107, 1
        %s176 = smul.addr %s175, 16
        %s177 = scalar_lea.vmem [#allocation2], %s176
        %p178 = scmp.lt.s32.totalorder %s21, 1
        %s179 = scalar_select %p178, %s21, 1
        %s180 = smul.addr %s179, 2
        %s181 = smul.addr %s180, 4
        %s182 = scalar_lea.vmem %s0, %s181
        %p184 = scmp.eq.s32.totalorder %s22, 0
        // Predicated region
        $region33: #{tpu_custom_call.1} parent=31 // pred_check
          %p185 = pneg %p184
        $region34: #{tpu_custom_call.1} parent=31 // pred_check_branch
          %187 = sbr.rel (%p185) target = $region36
        $region35: #{tpu_custom_call.1} parent=31 // pred_region
          %v188 = vld [vmem:[%s1] sm:$0xf]
          %v189 = vld [vmem:[%s1 + $0x4] sm:$0xf]
          %v190 = vld [vmem:[%s182] sm:$0xf]
          %v191 = vld [vmem:[%s2] sm:$0xff]
          %v192 = vld [vmem:[%s2 + $0x8] sm:$0xff]
          %194 = vset.pattern.permute.xlu0 0
          %195 = vperm.xlu0 %194, %v191
          %v196 = vpop.permute.xlu0 %195
          %199 = vset.pattern.permute.xlu0 0
          %200 = vperm.xlu0 %199, %v192
          %v201 = vpop.permute.xlu0 %200
          %v205 = vunpack.c.l.b16 %v188
          %v206 = vunpack.c.l.b16 %v189
          %v207 = vpack.c.b16 %v206, %v205
          %vm208 = vcmask 64512
          %v210 = vsel %vm208, %v207, 0
          %vm212 = vcmask 1043456
          %v214 = vsel %vm212, %v190, 0
          %216 = vmatpush.bf16.msra.mxu0 0
          %217 = vmatpush.bf16.msra.mxu0 0
          %218 = vmatpush.bf16.msra.mxu0 0
          %219 = vmatpush.bf16.msra.mxu0 0
          %220 = vmatpush.bf16.msra.mxu0 0
          %221 = vmatpush.bf16.msra.mxu0 0
          %222 = vmatpush.bf16.msra.mxu0 0
          %223 = vmatpush.bf16.msra.mxu0 %v214
          %224 = vmatmul.bf16.gmra.mxu0 %v210
          %v225 = vpop.f32.mrf.mxu0
          %v226 = vadd.f32 %v196, %v225
          %v227 = vpop.f32.mrf.mxu0
          %v228 = vadd.f32 %v201, %v227
          %229 = vdwg.mxu0
          %230 = vst [vmem:[%s177] sm:$0xff] %v226
          %231 = vst [vmem:[%s177 + $0x8] sm:$0xff] %v228
        $region36: #{tpu_custom_call.1} parent=31 // pred_fallthru
          _
        %p232 = scmp.eq.s32.totalorder %s22, 1
        // Predicated region
        $region37: #{tpu_custom_call.1} parent=31 // pred_check
          %p233 = pneg %p232
        $region38: #{tpu_custom_call.1} parent=31 // pred_check_branch
          %235 = sbr.rel (%p233) target = $region40
        $region39: #{tpu_custom_call.1} parent=31 // pred_region
          %s236 = scalar_lea.vmem %s1, 8
          %v237 = vld [vmem:[%s236] sm:$0xf]
          %v238 = vld [vmem:[%s236 + $0x4] sm:$0xf]
          %v239 = vld [vmem:[%s182] sm:$0xff]
          %s240 = scalar_lea.vmem %s1, 16
          %v241 = vld [vmem:[%s240] sm:$0xf]
          %v242 = vld [vmem:[%s240 + $0x4] sm:$0xf]
          %v243 = vld [vmem:[%s182] sm:$0xf]
          %v246 = vunpack.c.l.b16 %v241
          %v247 = vunpack.c.l.b16 %v242
          %v248 = vpack.c.b16 %v247, %v246
          %vm249 = vcmask 64512
          %v251 = vsel %vm249, %v248, 0
          %vm253 = vcmask 1043456
          %v255 = vsel %vm253, %v243, 0
          %257 = vmatpush.bf16.msra.mxu0 0
          %258 = vmatpush.bf16.msra.mxu0 0
          %259 = vmatpush.bf16.msra.mxu0 0
          %260 = vmatpush.bf16.msra.mxu0 0
          %261 = vmatpush.bf16.msra.mxu0 0
          %262 = vmatpush.bf16.msra.mxu0 0
          %263 = vmatpush.bf16.msra.mxu0 0
          %264 = vmatpush.bf16.msra.mxu0 %v255
          %265 = vmatmul.bf16.gmra.mxu0 %v251
          %v266 = vpop.f32.mrf.mxu0
          %v267 = vadd.f32 0.0, %v266
          %v268 = vpop.f32.mrf.mxu0
          %v269 = vadd.f32 0.0, %v268
          %270 = vdwg.mxu0
          %v273 = vunpack.c.l.b16 %v237
          %v274 = vunpack.c.l.b16 %v238
          %v275 = vpack.c.b16 %v274, %v273
          %v277 = vunpack.c.l.b16 %v239
          %v278 = vunpack.c.h.b16 %v239
          %v279 = vpack.c.b16 %v277, %v277
          %v280 = vpack.c.b16 %v278, %v278
          %281 = vrot.lane.b32.xlu0 %v279, 127
          %v282 = vpop.permute.xlu0 %281
          %283 = vrot.lane.b32.xlu0 %v280, 127
          %v284 = vpop.permute.xlu0 %283
          %vm285 = vcmask 1039360
          %v286 = vsel %vm285, %v282, %v284
          %v288 = vsel %vm249, %v275, 0
          %v291 = vsel %vm253, %v286, 0
          %293 = vmatpush.bf16.msra.mxu0 0
          %294 = vmatpush.bf16.msra.mxu0 0
          %295 = vmatpush.bf16.msra.mxu0 0
          %296 = vmatpush.bf16.msra.mxu0 0
          %297 = vmatpush.bf16.msra.mxu0 0
          %298 = vmatpush.bf16.msra.mxu0 0
          %299 = vmatpush.bf16.msra.mxu0 0
          %300 = vmatpush.bf16.msra.mxu0 %v291
          %301 = vmatmul.bf16.gmra.mxu0 %v288
          %v302 = vpop.f32.mrf.mxu0
          %v303 = vadd.f32 %v267, %v302
          %v304 = vpop.f32.mrf.mxu0
          %v305 = vadd.f32 %v269, %v304
          %306 = vdwg.mxu0
          %v307 = vld [vmem:[%s2] sm:$0xff]
          %v308 = vld [vmem:[%s2 + $0x8] sm:$0xff]
          %310 = vset.pattern.permute.xlu0 0
          %311 = vperm.xlu0 %310, %v307
          %v312 = vpop.permute.xlu0 %311
          %315 = vset.pattern.permute.xlu0 0
          %316 = vperm.xlu0 %315, %v308
          %v317 = vpop.permute.xlu0 %316
          %v319 = vadd.f32 %v303, %v312
          %v320 = vadd.f32 %v305, %v317
          %321 = vst [vmem:[%s177] sm:$0xff] %v319
          %322 = vst [vmem:[%s177 + $0x8] sm:$0xff] %v320
        $region40: #{tpu_custom_call.1} parent=31 // pred_fallthru
          _
        %p323 = scmp.eq.s32.totalorder %s22, 2
        // Predicated region
        $region41: #{tpu_custom_call.1} parent=31 // pred_check
          %p324 = pneg %p323
        $region42: #{tpu_custom_call.1} parent=31 // pred_check_branch
          %326 = sbr.rel (%p324) target = $region44
        $region43: #{tpu_custom_call.1} parent=31 // pred_region
          %s327 = scalar_lea.vmem %s1, 24
          %v328 = vld [vmem:[%s327] sm:$0xf]
          %v329 = vld [vmem:[%s327 + $0x4] sm:$0xf]
          %v330 = vld [vmem:[%s182] sm:$0xff]
          %s331 = scalar_lea.vmem %s1, 32
          %v332 = vld [vmem:[%s331] sm:$0xf]
          %v333 = vld [vmem:[%s331 + $0x4] sm:$0xf]
          %v334 = vld [vmem:[%s182] sm:$0xf]
          %v337 = vunpack.c.l.b16 %v332
          %v338 = vunpack.c.l.b16 %v333
          %v339 = vpack.c.b16 %v338, %v337
          %vm340 = vcmask 64512
          %v342 = vsel %vm340, %v339, 0
          %vm344 = vcmask 1043456
          %v346 = vsel %vm344, %v334, 0
          %348 = vmatpush.bf16.msra.mxu0 0
          %349 = vmatpush.bf16.msra.mxu0 0
          %350 = vmatpush.bf16.msra.mxu0 0
          %351 = vmatpush.bf16.msra.mxu0 0
          %352 = vmatpush.bf16.msra.mxu0 0
          %353 = vmatpush.bf16.msra.mxu0 0
          %354 = vmatpush.bf16.msra.mxu0 0
          %355 = vmatpush.bf16.msra.mxu0 %v346
          %356 = vmatmul.bf16.gmra.mxu0 %v342
          %v357 = vpop.f32.mrf.mxu0
          %v358 = vadd.f32 0.0, %v357
          %v359 = vpop.f32.mrf.mxu0
          %v360 = vadd.f32 0.0, %v359
          %361 = vdwg.mxu0
          %v364 = vunpack.c.l.b16 %v328
          %v365 = vunpack.c.l.b16 %v329
          %v366 = vpack.c.b16 %v365, %v364
          %v368 = vunpack.c.l.b16 %v330
          %v369 = vunpack.c.h.b16 %v330
          %v370 = vpack.c.b16 %v368, %v368
          %v371 = vpack.c.b16 %v369, %v369
          %372 = vrot.lane.b32.xlu0 %v370, 119
          %v373 = vpop.permute.xlu0 %372
          %374 = vrot.lane.b32.xlu0 %v371, 119
          %v375 = vpop.permute.xlu0 %374
          %vm376 = vcmask 973824
          %v377 = vsel %vm376, %v373, %v375
          %v379 = vsel %vm340, %v366, 0
          %v382 = vsel %vm344, %v377, 0
          %384 = vmatpush.bf16.msra.mxu0 0
          %385 = vmatpush.bf16.msra.mxu0 0
          %386 = vmatpush.bf16.msra.mxu0 0
          %387 = vmatpush.bf16.msra.mxu0 0
          %388 = vmatpush.bf16.msra.mxu0 0
          %389 = vmatpush.bf16.msra.mxu0 0
          %390 = vmatpush.bf16.msra.mxu0 0
          %391 = vmatpush.bf16.msra.mxu0 %v382
          %392 = vmatmul.bf16.gmra.mxu0 %v379
          %v393 = vpop.f32.mrf.mxu0
          %v394 = vadd.f32 %v358, %v393
          %v395 = vpop.f32.mrf.mxu0
          %v396 = vadd.f32 %v360, %v395
          %397 = vdwg.mxu0
          %v398 = vld [vmem:[%s2] sm:$0xff]
          %v399 = vld [vmem:[%s2 + $0x8] sm:$0xff]
          %401 = vset.pattern.permute.xlu0 0
          %402 = vperm.xlu0 %401, %v398
          %v403 = vpop.permute.xlu0 %402
          %406 = vset.pattern.permute.xlu0 0
          %407 = vperm.xlu0 %406, %v399
          %v408 = vpop.permute.xlu0 %407
          %v410 = vadd.f32 %v394, %v403
          %v411 = vadd.f32 %v396, %v408
          %412 = vst [vmem:[%s177] sm:$0xff] %v410
          %413 = vst [vmem:[%s177 + $0x8] sm:$0xff] %v411
        $region44: #{tpu_custom_call.1} parent=31 // pred_fallthru
          _
        %p414 = scmp.eq.s32.totalorder %s22, 3
        // Predicated region
        $region45: #{tpu_custom_call.1} parent=31 // pred_check
          %p415 = pneg %p414
        $region46: #{tpu_custom_call.1} parent=31 // pred_check_branch
          %417 = sbr.rel (%p415) target = $region48
        $region47: #{tpu_custom_call.1} parent=31 // pred_region
          %s418 = scalar_lea.vmem %s1, 40
          %v419 = vld [vmem:[%s418] sm:$0xf]
          %v420 = vld [vmem:[%s418 + $0x4] sm:$0xf]
          %v421 = vld [vmem:[%s182] sm:$0xff]
          %s422 = scalar_lea.vmem %s1, 48
          %v423 = vld [vmem:[%s422] sm:$0xf]
          %v424 = vld [vmem:[%s422 + $0x4] sm:$0xf]
          %v427 = vunpack.c.l.b16 %v423
          %v428 = vunpack.c.l.b16 %v424
          %v429 = vpack.c.b16 %v428, %v427
          %v431 = vunpack.c.l.b16 %v421
          %v432 = vunpack.c.h.b16 %v421
          %v433 = vpack.c.b16 %v431, %v431
          %v434 = vpack.c.b16 %v432, %v432
          %435 = vrot.lane.b32.xlu0 %v433, 119
          %v436 = vpop.permute.xlu0 %435
          %437 = vrot.lane.b32.xlu0 %v434, 119
          %v438 = vpop.permute.xlu0 %437
          %vm439 = vcmask 973824
          %v440 = vsel %vm439, %v436, %v438
          %vm441 = vcmask 64512
          %v443 = vsel %vm441, %v429, 0
          %vm445 = vcmask 1043456
          %v447 = vsel %vm445, %v440, 0
          %449 = vmatpush.bf16.msra.mxu0 0
          %450 = vmatpush.bf16.msra.mxu0 0
          %451 = vmatpush.bf16.msra.mxu0 0
          %452 = vmatpush.bf16.msra.mxu0 0
          %453 = vmatpush.bf16.msra.mxu0 0
          %454 = vmatpush.bf16.msra.mxu0 0
          %455 = vmatpush.bf16.msra.mxu0 0
          %456 = vmatpush.bf16.msra.mxu0 %v447
          %457 = vmatmul.bf16.gmra.mxu0 %v443
          %v458 = vpop.f32.mrf.mxu0
          %v459 = vadd.f32 0.0, %v458
          %v460 = vpop.f32.mrf.mxu0
          %v461 = vadd.f32 0.0, %v460
          %462 = vdwg.mxu0
          %v465 = vunpack.c.l.b16 %v419
          %v466 = vunpack.c.l.b16 %v420
          %v467 = vpack.c.b16 %v466, %v465
          %468 = vrot.lane.b32.xlu0 %v433, 118
          %v469 = vpop.permute.xlu0 %468
          %470 = vrot.lane.b32.xlu0 %v434, 118
          %v471 = vpop.permute.xlu0 %470
          %vm472 = vcmask 965632
          %v473 = vsel %vm472, %v469, %v471
          %v475 = vsel %vm441, %v467, 0
          %v478 = vsel %vm445, %v473, 0
          %480 = vmatpush.bf16.msra.mxu0 0
          %481 = vmatpush.bf16.msra.mxu0 0
          %482 = vmatpush.bf16.msra.mxu0 0
          %483 = vmatpush.bf16.msra.mxu0 0
          %484 = vmatpush.bf16.msra.mxu0 0
          %485 = vmatpush.bf16.msra.mxu0 0
          %486 = vmatpush.bf16.msra.mxu0 0
          %487 = vmatpush.bf16.msra.mxu0 %v478
          %488 = vmatmul.bf16.gmra.mxu0 %v475
          %v489 = vpop.f32.mrf.mxu0
          %v490 = vadd.f32 %v459, %v489
          %v491 = vpop.f32.mrf.mxu0
          %v492 = vadd.f32 %v461, %v491
          %493 = vdwg.mxu0
          %s494 = scalar_lea.vmem %s1, 56
          %v495 = vld [vmem:[%s494] sm:$0xf]
          %v496 = vld [vmem:[%s494 + $0x4] sm:$0xf]
          %v499 = vunpack.c.l.b16 %v495
          %v500 = vunpack.c.l.b16 %v496
          %v501 = vpack.c.b16 %v500, %v499
          %502 = vrot.lane.b32.xlu0 %v433, 127
          %v503 = vpop.permute.xlu0 %502
          %504 = vrot.lane.b32.xlu0 %v434, 127
          %v505 = vpop.permute.xlu0 %504
          %vm506 = vcmask 1039360
          %v507 = vsel %vm506, %v503, %v505
          %v509 = vsel %vm441, %v501, 0
          %v512 = vsel %vm445, %v507, 0
          %514 = vmatpush.bf16.msra.mxu0 0
          %515 = vmatpush.bf16.msra.mxu0 0
          %516 = vmatpush.bf16.msra.mxu0 0
          %517 = vmatpush.bf16.msra.mxu0 0
          %518 = vmatpush.bf16.msra.mxu0 0
          %519 = vmatpush.bf16.msra.mxu0 0
          %520 = vmatpush.bf16.msra.mxu0 0
          %521 = vmatpush.bf16.msra.mxu0 %v512
          %522 = vmatmul.bf16.gmra.mxu0 %v509
          %v523 = vpop.f32.mrf.mxu0
          %v524 = vadd.f32 0.0, %v523
          %v525 = vpop.f32.mrf.mxu0
          %v526 = vadd.f32 0.0, %v525
          %527 = vdwg.mxu0
          %v528 = vadd.f32 %v490, %v524
          %v529 = vadd.f32 %v492, %v526
          %s530 = scalar_lea.vmem %s1, 64
          %v531 = vld [vmem:[%s530] sm:$0xf]
          %v532 = vld [vmem:[%s530 + $0x4] sm:$0xf]
          %v533 = vld [vmem:[%s182] sm:$0xf]
          %v536 = vunpack.c.l.b16 %v531
          %v537 = vunpack.c.l.b16 %v532
          %v538 = vpack.c.b16 %v537, %v536
          %v540 = vsel %vm441, %v538, 0
          %v543 = vsel %vm445, %v533, 0
          %545 = vmatpush.bf16.msra.mxu0 0
          %546 = vmatpush.bf16.msra.mxu0 0
          %547 = vmatpush.bf16.msra.mxu0 0
          %548 = vmatpush.bf16.msra.mxu0 0
          %549 = vmatpush.bf16.msra.mxu0 0
          %550 = vmatpush.bf16.msra.mxu0 0
          %551 = vmatpush.bf16.msra.mxu0 0
          %552 = vmatpush.bf16.msra.mxu0 %v543
          %553 = vmatmul.bf16.gmra.mxu0 %v540
          %v554 = vpop.f32.mrf.mxu0
          %v555 = vadd.f32 0.0, %v554
          %v556 = vpop.f32.mrf.mxu0
          %v557 = vadd.f32 0.0, %v556
          %558 = vdwg.mxu0
          %v559 = vadd.f32 %v528, %v555
          %v560 = vadd.f32 %v529, %v557
          %v561 = vld [vmem:[%s2] sm:$0xff]
          %v562 = vld [vmem:[%s2 + $0x8] sm:$0xff]
          %564 = vset.pattern.permute.xlu0 0
          %565 = vperm.xlu0 %564, %v561
          %v566 = vpop.permute.xlu0 %565
          %569 = vset.pattern.permute.xlu0 0
          %570 = vperm.xlu0 %569, %v562
          %v571 = vpop.permute.xlu0 %570
          %v573 = vadd.f32 %v559, %v566
          %v574 = vadd.f32 %v560, %v571
          %575 = vst [vmem:[%s177] sm:$0xff] %v573
          %576 = vst [vmem:[%s177 + $0x8] sm:$0xff] %v574
        $region48: #{tpu_custom_call.1} parent=31 // pred_fallthru
          _
        %s577 = sand.u32 %s107, 1
        %s578 = scalar_lea.sflag [#allocation3], %s577
        %s579 = sand.u32 %s107, 1
        %s580 = smul.addr %s579, 16
        %s581 = scalar_lea.vmem [#allocation2], %s580
        // Predicated region
        $region49: #{tpu_custom_call.1} parent=31 // pred_check
          %p582 = pneg %p117
        $region50: #{tpu_custom_call.1} parent=31 // pred_check_branch
          %584 = sbr.rel (%p582) target = $region52
        $region51: #{tpu_custom_call.1} parent=31 // pred_region
          %586 = vsyncadd %s578, 0
          %s587 = smul.addr %s22, 2
          %s588 = smul.addr %s21, 8
          %s589 = sadd.s32 %s587, %s588
          %s590 = smul.addr %s589, 8
          %s591 = scalar_lea.hbm %s3, %s590
          %s592 = sshll.u32 %s581, 4
          %s593 = int_to_ptr.vmem [resolvable:$true] %s592
          %s594 = sshll.u32 %s591, 4
          %s595 = int_to_ptr.hbm [resolvable:$true] %s594
          %600 = dma.vmem_to_hbm [thread:$0]  %s593, 256, %s595, %s578, 128, 128, 8
        $region52: #{tpu_custom_call.1} parent=31 // pred_fallthru
          _
      $region32: #{tpu_custom_call.1} parent=5 // pred_fallthru
        _
      %p601 = scmp.le.s32.totalorder 2, %s12
      // Predicated region
      $region53: #{tpu_custom_call.1} parent=5 // pred_check
        %p602 = pneg %p601
      $region54: #{tpu_custom_call.1} parent=5 // pred_check_branch
        %604 = sbr.rel (%p602) target = $region56
      $region55: #{tpu_custom_call.1} parent=5 // pred_region
        %s605 = ssub.s32 %s12, 2
        // Predicated region
        $region57: #{tpu_custom_call.1} parent=55 // pred_check
          %p606 = pneg %p123
        $region58: #{tpu_custom_call.1} parent=55 // pred_check_branch
          %608 = sbr.rel (%p606) target = $region60
        $region59: #{tpu_custom_call.1} parent=55 // pred_region
          %s609 = sand.u32 %s108, 1
          %s610 = scalar_lea.sflag [#allocation3], %s609
          %s611 = sand.u32 %s108, 1
          %s612 = smul.addr %s611, 16
          %s613 = scalar_lea.vmem [#allocation2], %s612
          %615 = dma.done %s610, 256
        $region60: #{tpu_custom_call.1} parent=55 // pred_fallthru
          _
      $region56: #{tpu_custom_call.1} parent=5 // pred_fallthru
        _
    $region6: #{tpu_custom_call.1} parent=1 // loop_footer
      %s16 = sadd.s32 1, %s12
    $region7: #{tpu_custom_call.1} parent=1 // loop_footer_branch
      %11 = sbr.rel target = $region3
    $region8: #{tpu_custom_call.1} parent=1 // loop_exit
      _
    %616 = vsyncpa [#allocation3], 1
    %s617 = scalar_lea.sflag [#allocation3], 1
    %618 = vsyncpa %s617, 1

</llo_original>
